<compile_context>
chip_gen: v6e
topology: v6e:2x2x1
jax: 0.10.0
libtpu: 0.0.40
codegen_flags: <defaults>
</compile_context>

<pallas_src>
import jax
import jax.numpy as jnp
from jax.experimental import pallas as pl
from jax.experimental.pallas import tpu as pltpu


def _round_up(a, b):
    return (a + b - 1) // b * b


def _normalize_kernel(x_ref, scale_ref, shift_ref, o_ref):
    # x_ref: (r_tile, t_tile); scale_ref/shift_ref: (r_tile, 1).
    # Single fused multiply-add; (r_tile, 1) broadcasts over the lane dim.
    o_ref[...] = x_ref[...] * scale_ref[...] - shift_ref[...]


def normalize_sequence(x, mean, std, *, max_t_tile=512, max_r_tile=512):
    """x: (B, C, T); mean/std: per-channel, length C (any broadcastable shape)."""
    B, C, T = x.shape
    dtype = x.dtype

    mean = jnp.asarray(mean, dtype=dtype).reshape(C)
    std = jnp.asarray(std, dtype=dtype).reshape(C)

    # (x - mean) / std  ==  x * (1/std) - mean * (1/std)
    scale = 1.0 / std
    shift = mean * scale

    # 2-D view: rows = (batch, channel) pairs, lanes = time.
    R = B * C
    x2 = x.reshape(R, T)
    # Row r = b * C + c  ->  channel c = r % C; jnp.tile matches this order.
    scale_r = jnp.tile(scale, B).reshape(R, 1)
    shift_r = jnp.tile(shift, B).reshape(R, 1)

    # --- Lane (time) tiling: lane-dense, multiple of 128. ---
    LANE = 128
    t_tile = min(max_t_tile, _round_up(T, LANE))
    T_pad = _round_up(T, t_tile)          # t_tile always divides T_pad
    if T_pad != T:
        x2 = jnp.pad(x2, ((0, 0), (0, T_pad - T)))

    # --- Row (sublane) tiling: either the full row extent or a multiple of 8. ---
    if R <= max_r_tile:
        r_tile = R                        # equals full dim -> always legal
    else:
        r_tile = max_r_tile               # multiple of 8; ragged edge is masked
    grid_r = pl.cdiv(R, r_tile)
    grid_t = T_pad // t_tile

    # Keep >= 2 parallel grid steps when there is enough work (v7x has 2 TCs).
    if grid_r * grid_t < 2 and R >= 16:
        r_tile = _round_up(pl.cdiv(R, 2), 8)
        grid_r = pl.cdiv(R, r_tile)

    out2 = pl.pallas_call(
        _normalize_kernel,
        out_shape=jax.ShapeDtypeStruct((R, T_pad), dtype),
        grid=(grid_r, grid_t),
        in_specs=[
            pl.BlockSpec((r_tile, t_tile), lambda r, t: (r, t)),
            pl.BlockSpec((r_tile, 1), lambda r, t: (r, 0)),
            pl.BlockSpec((r_tile, 1), lambda r, t: (r, 0)),
        ],
        out_specs=pl.BlockSpec((r_tile, t_tile), lambda r, t: (r, t)),
        compiler_params=pltpu.CompilerParams(
            dimension_semantics=("parallel", "parallel")
        ),
    )(x2, scale_r, shift_r)

    if T_pad != T:
        out2 = out2[:, :T]
    return out2.reshape(B, C, T)


if __name__ == "__main__":
    key = jax.random.PRNGKey(0)
    B, C, T = 2, 4, 16  # (batch_size, num_channels, timesteps)

    kx, _, _ = jax.random.split(key, 3)
    x = jax.random.normal(kx, (B, C, T), dtype=jnp.float32)
    # Deterministic "parameters" (the mean/std lists passed to __init__).
    mean = jnp.arange(C, dtype=jnp.float32) * 0.1 - 0.15        # (C,)
    std = 0.5 + 0.25 * jnp.arange(C, dtype=jnp.float32)         # (C,) strictly > 0

    out = normalize_sequence(x, mean, std)
    out = jax.block_until_ready(out)

    # Reference check (pure JAX, mirrors the PyTorch broadcast semantics).
    ref = (x - mean.reshape(C, 1)[None]) / std.reshape(C, 1)[None]
    assert out.shape == (B, C, T)
    assert out.dtype == jnp.float32
    # scale/shift rewrite differs from the divide by ~1 ulp -> slightly looser tol.
    assert jnp.allclose(out, ref, atol=1e-5, rtol=1e-5)

    print("KERNEL_OK")
</pallas_src>

<mosaic_0001>
module attributes {stable_mosaic.version = 11 : i64} {
  func.func @_normalize_kernel(%arg0: i32, %arg1: i32, %arg2: memref<8x128xf32, #tpu.memory_space<vmem>>, %arg3: memref<8x1xf32, #tpu.memory_space<vmem>>, %arg4: memref<8x1xf32, #tpu.memory_space<vmem>>, %arg5: memref<8x128xf32, #tpu.memory_space<vmem>>) attributes {dimension_semantics = [#tpu.dimension_semantics<parallel>, #tpu.dimension_semantics<parallel>], iteration_bounds = array<i64: 1, 1>, scalar_prefetch = 0 : i64, scratch_operands = 0 : i64, tpu.core_type = #tpu.core_type<tc>, window_params = [{transform_indices = @transform_0, window_bounds = array<i64: 8, 128>}, {transform_indices = @transform_1, window_bounds = array<i64: 8, 1>}, {transform_indices = @transform_2, window_bounds = array<i64: 8, 1>}, {transform_indices = @transform_3, window_bounds = array<i64: 8, 128>}]} {
    %c0 = arith.constant 0 : index
    %c0_0 = arith.constant 0 : index
    %0 = vector.load %arg2[%c0, %c0_0] : memref<8x128xf32, #tpu.memory_space<vmem>>, vector<8x128xf32>
    %c0_1 = arith.constant 0 : index
    %c0_2 = arith.constant 0 : index
    %1 = vector.load %arg3[%c0_1, %c0_2] : memref<8x1xf32, #tpu.memory_space<vmem>>, vector<8x1xf32>
    %2 = vector.broadcast %1 : vector<8x1xf32> to vector<8x128xf32>
    %3 = arith.mulf %0, %2 : vector<8x128xf32>
    %c0_3 = arith.constant 0 : index
    %c0_4 = arith.constant 0 : index
    %4 = vector.load %arg4[%c0_3, %c0_4] : memref<8x1xf32, #tpu.memory_space<vmem>>, vector<8x1xf32>
    %5 = vector.broadcast %4 : vector<8x1xf32> to vector<8x128xf32>
    %6 = arith.subf %3, %5 : vector<8x128xf32>
    %c0_5 = arith.constant 0 : index
    %c0_6 = arith.constant 0 : index
    %7 = vector.load %arg5[%c0_5, %c0_6] : memref<8x128xf32, #tpu.memory_space<vmem>>, vector<8x128xf32>
    tpu.vector_store %arg5[%c0_5, %c0_6], %6 {strides = array<i32>} : memref<8x128xf32, #tpu.memory_space<vmem>>, vector<8x128xf32>,
    return
  }
  func.func @transform_0(%arg0: i32, %arg1: i32) -> (i32, i32) {
    %c0_i32 = arith.constant 0 : i32
    return %arg0, %arg1 : i32, i32
  }
  func.func @transform_1(%arg0: i32, %arg1: i32) -> (i32, i32) {
    %c0_i32 = arith.constant 0 : i32
    %c0_i32_0 = arith.constant 0 : i32
    return %arg0, %c0_i32 : i32, i32
  }
  func.func @transform_2(%arg0: i32, %arg1: i32) -> (i32, i32) {
    %c0_i32 = arith.constant 0 : i32
    %c0_i32_0 = arith.constant 0 : i32
    return %arg0, %c0_i32 : i32, i32
  }
  func.func @transform_3(%arg0: i32, %arg1: i32) -> (i32, i32) {
    %c0_i32 = arith.constant 0 : i32
    return %arg0, %arg1 : i32, i32
  }
}

</mosaic_0001>

<llo_original>
// kernel: tpu_custom_call.1
$region0: #{tpu_custom_call.1}
  #allocation0 [shape = 'u32[]', space=smem, size = 0x4, offset = 0x4, fixed_abs, tag = 'smem constant byte address 0x4 - core index']
  #allocation1 [shape = 'u32[144,128]{1,0:T(1,128)}', space=vmem, size = 0x12000, scoped, tag = 'internal scratch']
  %s0 = inlined_call_operand.vmem [shape: f32[8,128], index: 0, kind: input, shape index: {}]
  %s1 = inlined_call_operand.vmem [shape: f32[8,1], index: 1, kind: input, shape index: {}]
  %s2 = inlined_call_operand.vmem [shape: f32[8,1], index: 2, kind: input, shape index: {}]
  %s3 = inlined_call_operand.hbm [shape: f32[8,128], index: 3, kind: output, shape index: {}]
  %s4 = sld [smem:[#allocation0]]
  $region22: #{tpu_custom_call.1} parent=0
    _
  %s6 = ssub.s32 1, %s4
  %s7 = scalar_select 0, %s6, %s4
  $region1: #{tpu_custom_call.1} parent=0
    #allocation2 [shape = 'u8[4096]{0}', space=vmem, size = 0x1000, scoped, tag = 'output window, operand 0, single buffered']
    #allocation3 [shape = 's32[1]{0}', space=sflag, size = 0x4, scoped, tag = 'scoped memory for tpu_custom_call.1']
    %8 = vsyncpa [#allocation3], 0
    // Predicated region
    $region2: #{tpu_custom_call.1} parent=1 // pred_check
      _
    $region3: #{tpu_custom_call.1} parent=1 // pred_check_branch
      %10 = sbr.rel (0) target = $region5
    $region4: #{tpu_custom_call.1} parent=1 // pred_region
      _
    $region5: #{tpu_custom_call.1} parent=1 // pred_fallthru
      _
    // Predicated region
    $region6: #{tpu_custom_call.1} parent=1 // pred_check
      _
    $region7: #{tpu_custom_call.1} parent=1 // pred_check_branch
      %12 = sbr.rel (0) target = $region9
    $region8: #{tpu_custom_call.1} parent=1 // pred_region
      _
    $region9: #{tpu_custom_call.1} parent=1 // pred_fallthru
      _
    // Predicated region
    $region10: #{tpu_custom_call.1} parent=1 // pred_check
      _
    $region11: #{tpu_custom_call.1} parent=1 // pred_check_branch
      %14 = sbr.rel (0) target = $region13
    $region12: #{tpu_custom_call.1} parent=1 // pred_region
      _
    $region13: #{tpu_custom_call.1} parent=1 // pred_fallthru
      _
    %v15 = vld [vmem:[%s0] sm:$0xff]
    %v16 = vld [vmem:[%s1] sm:$0xff]
    %18 = vset.pattern.permute.xlu0 0
    %19 = vperm.xlu0 %18, %v16
    %v20 = vpop.permute.xlu0 %19
    %v22 = vmul.f32 %v15, %v20
    %v23 = vld [vmem:[%s2] sm:$0xff]
    %25 = vset.pattern.permute.xlu0 0
    %26 = vperm.xlu0 %25, %v23
    %v27 = vpop.permute.xlu0 %26
    %v29 = vsub.f32 %v22, %v27
    %30 = vst [vmem:[#allocation2] sm:$0xff] %v29
    // Predicated region
    $region14: #{tpu_custom_call.1} parent=1 // pred_check
      _
    $region15: #{tpu_custom_call.1} parent=1 // pred_check_branch
      %32 = sbr.rel (0) target = $region17
    $region16: #{tpu_custom_call.1} parent=1 // pred_region
      %s34 = ssub.s32 128, 128
      %35 = vsyncadd [#allocation3], %s34
      %s37 = sshll.u32 [#allocation2], 4
      %s38 = int_to_ptr.vmem [resolvable:$true] %s37
      %40 = dma.vmem_to_hbm [thread:$0]  %s38, 128, %s3, [#allocation3]
    $region17: #{tpu_custom_call.1} parent=1 // pred_fallthru
      _
    // Predicated region
    $region18: #{tpu_custom_call.1} parent=1 // pred_check
      _
    $region19: #{tpu_custom_call.1} parent=1 // pred_check_branch
      %42 = sbr.rel (0) target = $region21
    $region20: #{tpu_custom_call.1} parent=1 // pred_region
      %43 = dma.done [#allocation3], 128
    $region21: #{tpu_custom_call.1} parent=1 // pred_fallthru
      _
    %44 = vsyncpa [#allocation3], 1

</llo_original>
